<compile_context>
chip_gen: v5e
topology: v5e:2x2
jax: 0.10.0
libtpu: 0.0.40
codegen_flags: <defaults>
</compile_context>

<pallas_src>
import functools

import jax
import jax.numpy as jnp
from jax import lax
from jax.experimental import pallas as pl
from jax.experimental.pallas import tpu as pltpu

H1, H2 = 16, 8     # hidden widths fixed by the module: Linear(in,16)->Linear(16,8)->Linear(8,out)
LANES = 128        # slab lane width (vreg lane count)


def _mlp_kernel(x_ref, p_ref, o_ref, *, in_dim, out_dim):
    # Static-offset slices into the packed parameter slab (all (out, in) layout).
    r = 0
    w1 = p_ref[r:r + H1, :in_dim];   r += H1         # (16, in_dim)
    b1 = p_ref[r:r + 1, :H1];        r += 1          # (1, 16)
    w2 = p_ref[r:r + H2, :H1];       r += H2         # (8, 16)
    b2 = p_ref[r:r + 1, :H2];        r += 1          # (1, 8)
    w3 = p_ref[r:r + out_dim, :H2];  r += out_dim    # (out_dim, 8)
    b3 = p_ref[r:r + out_dim, 0:1]                   # (out_dim, 1) column

    nt = (((1,), (1,)), ((), ()))   # contract last dims: A @ B^T (torch Linear layout)

    x = x_ref[...]                                                        # (TM, in_dim)
    a1 = lax.dot_general(x, w1, nt, preferred_element_type=jnp.float32) + b1
    a1 = jnp.maximum(a1, 0.0)                                             # (TM, 16)
    a2 = lax.dot_general(a1, w2, nt, preferred_element_type=jnp.float32) + b2
    a2 = jnp.maximum(a2, 0.0)                                             # (TM, 8)
    # Final layer computed transposed so the TM batch axis is lane-dense.
    y = lax.dot_general(w3, a2, nt, preferred_element_type=jnp.float32) + b3
    o_ref[...] = y.astype(o_ref.dtype)                                    # (out_dim, TM)


def pack_params(params, input_dim, output_dim):
    """Pack (w1,b1,w2,b2,w3,b3) ONCE into a single (rows, 128) f32 slab.

    Call this once at init time; the forward takes the packed slab directly,
    so no per-call transposes/reshapes are dispatched.
    """
    w1, b1, w2, b2, w3, b3 = params
    assert max(input_dim, H1, H2, output_dim) <= LANES
    rows = H1 + 1 + H2 + 1 + output_dim + output_dim
    rows_p = ((rows + 7) // 8) * 8
    slab = jnp.zeros((rows_p, LANES), jnp.float32)
    r = 0
    slab = slab.at[r:r + H1, :input_dim].set(w1.astype(jnp.float32));   r += H1
    slab = slab.at[r, :H1].set(b1.astype(jnp.float32));                 r += 1
    slab = slab.at[r:r + H2, :H1].set(w2.astype(jnp.float32));          r += H2
    slab = slab.at[r, :H2].set(b2.astype(jnp.float32));                 r += 1
    slab = slab.at[r:r + output_dim, :H2].set(w3.astype(jnp.float32));  r += output_dim
    slab = slab.at[r:r + output_dim, 0].set(b3.astype(jnp.float32))     # b3 as a column
    return slab


def mymodel_forward(x, packed, *, output_dim, tile_m=1024):
    """x: (batch, input_dim) f32; packed: slab from pack_params.
    Returns (batch,) when output_dim == 1 (matching torch's x.squeeze(1))."""
    batch, in_dim = x.shape
    rows_p = packed.shape[0]
    tm = batch if batch <= tile_m else tile_m
    n_tiles = pl.cdiv(batch, tm)

    flops = 2 * batch * (in_dim * H1 + H1 * H2 + H2 * output_dim)
    bytes_accessed = (batch * in_dim + rows_p * LANES + output_dim * batch) * 4

    yT = pl.pallas_call(
        functools.partial(_mlp_kernel, in_dim=in_dim, out_dim=output_dim),
        out_shape=jax.ShapeDtypeStruct((output_dim, batch), x.dtype),
        grid=(n_tiles,),
        in_specs=[
            pl.BlockSpec((tm, in_dim), lambda i: (i, 0)),        # batch-tiled x
            pl.BlockSpec((rows_p, LANES), lambda i: (0, 0)),     # VMEM-resident slab
        ],
        out_specs=pl.BlockSpec((output_dim, tm), lambda i: (0, i)),  # lane-dense output
        compiler_params=pltpu.CompilerParams(
            dimension_semantics=("parallel",)),
        cost_estimate=pl.CostEstimate(
            flops=flops, transcendentals=0, bytes_accessed=bytes_accessed),
    )(x, packed)

    # torch's x.squeeze(1): drops dim 1 only when it is size 1.
    if output_dim == 1:
        return yT[0]          # (batch,)
    return yT.T               # (batch, output_dim)


def init_params(key, input_dim, output_dim):
    """Deterministic init mimicking torch.nn.Linear defaults (Kaiming-uniform-ish)."""
    dims = [(H1, input_dim), (H2, H1), (output_dim, H2)]
    params = []
    for i, (out_d, in_d) in enumerate(dims):
        kw, kb = jax.random.split(jax.random.fold_in(key, i))
        bound = 1.0 / (in_d ** 0.5)
        w = jax.random.uniform(kw, (out_d, in_d), jnp.float32, -bound, bound)
        b = jax.random.uniform(kb, (out_d,), jnp.float32, -bound, bound)
        params.extend([w, b])
    return tuple(params)


if __name__ == "__main__":
    input_dim, output_dim, batch = 32, 1, 8
    key = jax.random.PRNGKey(0)
    kx, kp = jax.random.split(key)
    x = jax.random.normal(kx, (batch, input_dim), jnp.float32)
    params = init_params(kp, input_dim, output_dim)

    # One-time packing (outside the forward -> no per-call transposes/reshapes).
    packed = pack_params(params, input_dim, output_dim)
    fwd = jax.jit(functools.partial(mymodel_forward, output_dim=output_dim))

    y = fwd(x, packed)
    jax.block_until_ready(y)

    # Pure-JAX reference check.
    w1, b1, w2, b2, w3, b3 = params
    ref = jnp.maximum(x @ w1.T + b1, 0.0)
    ref = jnp.maximum(ref @ w2.T + b2, 0.0)
    ref = (ref @ w3.T + b3).reshape(batch)
    assert y.shape == (batch,)
    assert jnp.allclose(y, ref, atol=1e-5, rtol=1e-5)

    print("KERNEL_OK")
</pallas_src>

<mosaic_0001>
module attributes {stable_mosaic.version = 11 : i64} {
  func.func @_mlp_kernel(%arg0: i32, %arg1: memref<8x32xf32, #tpu.memory_space<vmem>>, %arg2: memref<32x128xf32, #tpu.memory_space<vmem>>, %arg3: memref<1x8xf32, #tpu.memory_space<vmem>>) attributes {dimension_semantics = [#tpu.dimension_semantics<parallel>], iteration_bounds = array<i64: 1>, scalar_prefetch = 0 : i64, scratch_operands = 0 : i64, tpu.core_type = #tpu.core_type<tc>, window_params = [{transform_indices = @transform_0, window_bounds = array<i64: 8, 32>}, {pipeline_mode = #tpu.pipeline_mode<synchronous>, transform_indices = @transform_1, window_bounds = array<i64: 32, 128>}, {transform_indices = @transform_2, window_bounds = array<i64: 1, 8>}]} {
    %c0 = arith.constant 0 : index
    %c0_0 = arith.constant 0 : index
    %0 = vector.load %arg2[%c0, %c0_0] : memref<32x128xf32, #tpu.memory_space<vmem>>, vector<16x32xf32>
    %c16 = arith.constant 16 : index
    %c0_1 = arith.constant 0 : index
    %1 = vector.load %arg2[%c16, %c0_1] : memref<32x128xf32, #tpu.memory_space<vmem>>, vector<1x16xf32>
    %c17 = arith.constant 17 : index
    %c0_2 = arith.constant 0 : index
    %2 = vector.load %arg2[%c17, %c0_2] : memref<32x128xf32, #tpu.memory_space<vmem>>, vector<8x16xf32>
    %c25 = arith.constant 25 : index
    %c0_3 = arith.constant 0 : index
    %3 = vector.load %arg2[%c25, %c0_3] : memref<32x128xf32, #tpu.memory_space<vmem>>, vector<1x8xf32>
    %c26 = arith.constant 26 : index
    %c0_4 = arith.constant 0 : index
    %4 = vector.load %arg2[%c26, %c0_4] : memref<32x128xf32, #tpu.memory_space<vmem>>, vector<1x8xf32>
    %c27 = arith.constant 27 : index
    %c0_5 = arith.constant 0 : index
    %5 = vector.load %arg2[%c27, %c0_5] : memref<32x128xf32, #tpu.memory_space<vmem>>, vector<1x1xf32>
    %c0_6 = arith.constant 0 : index
    %c0_7 = arith.constant 0 : index
    %6 = vector.load %arg1[%c0_6, %c0_7] : memref<8x32xf32, #tpu.memory_space<vmem>>, vector<8x32xf32>
    %cst = arith.constant dense<0.000000e+00> : vector<8x16xf32>
    %7 = tpu.matmul %6, %0, %cst {dimension_numbers = #tpu.dot_dimension_numbers<[1], [1], [0], [0], [0, 0, 1, 0], [], []>} : vector<8x32xf32>, vector<16x32xf32>, vector<8x16xf32> -> vector<8x16xf32>
    %8 = vector.broadcast %1 : vector<1x16xf32> to vector<8x16xf32>
    %9 = arith.addf %7, %8 : vector<8x16xf32>
    %cst_8 = arith.constant 0.000000e+00 : f32
    %10 = vector.broadcast %cst_8 : f32 to vector<8x16xf32>
    %11 = arith.maximumf %9, %10 : vector<8x16xf32>
    %cst_9 = arith.constant dense<0.000000e+00> : vector<8x8xf32>
    %12 = tpu.matmul %11, %2, %cst_9 {dimension_numbers = #tpu.dot_dimension_numbers<[1], [1], [0], [0], [0, 0, 1, 0], [], []>} : vector<8x16xf32>, vector<8x16xf32>, vector<8x8xf32> -> vector<8x8xf32>
    %13 = vector.broadcast %3 : vector<1x8xf32> to vector<8x8xf32>
    %14 = arith.addf %12, %13 : vector<8x8xf32>
    %cst_10 = arith.constant 0.000000e+00 : f32
    %15 = vector.broadcast %cst_10 : f32 to vector<8x8xf32>
    %16 = arith.maximumf %14, %15 : vector<8x8xf32>
    %cst_11 = arith.constant dense<0.000000e+00> : vector<1x8xf32>
    %17 = tpu.matmul %4, %16, %cst_11 {dimension_numbers = #tpu.dot_dimension_numbers<[1], [1], [0], [0], [0, 0, 1, 0], [], []>} : vector<1x8xf32>, vector<8x8xf32>, vector<1x8xf32> -> vector<1x8xf32>
    %18 = vector.broadcast %5 : vector<1x1xf32> to vector<1x8xf32>
    %19 = arith.addf %17, %18 : vector<1x8xf32>
    %c0_12 = arith.constant 0 : index
    %c0_13 = arith.constant 0 : index
    %20 = vector.load %arg3[%c0_12, %c0_13] : memref<1x8xf32, #tpu.memory_space<vmem>>, vector<1x8xf32>
    tpu.vector_store %arg3[%c0_12, %c0_13], %19 {strides = array<i32>} : memref<1x8xf32, #tpu.memory_space<vmem>>, vector<1x8xf32>,
    return
  }
  func.func @transform_0(%arg0: i32) -> (i32, i32) {
    %c0_i32 = arith.constant 0 : i32
    %c0_i32_0 = arith.constant 0 : i32
    return %arg0, %c0_i32 : i32, i32
  }
  func.func @transform_1(%arg0: i32) -> (i32, i32) {
    %c0_i32 = arith.constant 0 : i32
    %c0_i32_0 = arith.constant 0 : i32
    %c0_i32_1 = arith.constant 0 : i32
    return %c0_i32, %c0_i32_0 : i32, i32
  }
  func.func @transform_2(%arg0: i32) -> (i32, i32) {
    %c0_i32 = arith.constant 0 : i32
    %c0_i32_0 = arith.constant 0 : i32
    return %c0_i32, %arg0 : i32, i32
  }
}

</mosaic_0001>

<llo_original>
// kernel: mymodel_forward.1
$region0: #{mymodel_forward.1}
  #allocation0 [shape = 'u32[]', space=smem, size = 0x4, offset = 0x4, fixed_abs, tag = 'smem constant byte address 0x4 - core index']
  #allocation1 [shape = 'u32[72,128]{1,0:T(1,128)}', space=vmem, size = 0x9000, scoped, tag = 'internal scratch']
  %s0 = inlined_call_operand.hbm [shape: f32[8,32], index: 0, kind: input, shape index: {}]
  %s1 = inlined_call_operand.hbm [shape: f32[32,128], index: 1, kind: input, shape index: {}]
  %s2 = inlined_call_operand.hbm [shape: f32[1,8], index: 2, kind: output, shape index: {}]
  %s3 = sld [smem:[#allocation0]]
  $region26: #{mymodel_forward.1} parent=0
    _
  %s5 = ssub.s32 1, %s3
  %s6 = scalar_select 0, %s5, %s3
  $region1: #{mymodel_forward.1} parent=0
    #allocation2 [shape = 'u8[4096]{0}', space=vmem, size = 0x1000, scoped, tag = 'input window, operand 0, single buffered']
    #allocation3 [shape = 's32[1]{0}', space=sflag, size = 0x4, scoped, tag = 'scoped memory for mymodel_forward.1']
    #allocation4 [shape = 's32[1]{0}', space=sflag, size = 0x4, scoped, tag = 'scoped memory for mymodel_forward.1']
    #allocation5 [shape = 'u8[16384]{0}', space=vmem, size = 0x4000, scoped, tag = 'input window, operand 1, single buffered']
    #allocation6 [shape = 's32[1]{0}', space=sflag, size = 0x4, scoped, tag = 'scoped memory for mymodel_forward.1']
    #allocation7 [shape = 'u8[512]{0}', space=vmem, size = 0x400, scoped, tag = 'output window, operand 0, single buffered']
    %7 = vsyncpa [#allocation3], 0
    %8 = vsyncpa [#allocation6], 0
    %9 = vsyncpa [#allocation4], 0
    // Predicated region
    $region2: #{mymodel_forward.1} parent=1 // pred_check
      _
    $region3: #{mymodel_forward.1} parent=1 // pred_check_branch
      %11 = sbr.rel (0) target = $region5
    $region4: #{mymodel_forward.1} parent=1 // pred_region
      %13 = vsyncadd [#allocation3], 0
      %s15 = sshll.u32 %s0, 4
      %s16 = int_to_ptr.hbm [resolvable:$true] %s15
      %s17 = sshll.u32 [#allocation2], 4
      %s18 = int_to_ptr.vmem [resolvable:$true] %s17
      %20 = dma.hbm_to_vmem [thread:$0]  %s16, 128, %s18, [#allocation3]
    $region5: #{mymodel_forward.1} parent=1 // pred_fallthru
      _
    // Predicated region
    $region6: #{mymodel_forward.1} parent=1 // pred_check
      _
    $region7: #{mymodel_forward.1} parent=1 // pred_check_branch
      %22 = sbr.rel (0) target = $region9
    $region8: #{mymodel_forward.1} parent=1 // pred_region
      %24 = vsyncadd [#allocation6], 0
      %s25 = sshll.u32 %s1, 4
      %s26 = int_to_ptr.hbm [resolvable:$true] %s25
      %s27 = sshll.u32 [#allocation5], 4
      %s28 = int_to_ptr.vmem [resolvable:$true] %s27
      %33 = dma.hbm_to_vmem [thread:$0]  %s26, 512, %s28, [#allocation6], 128, 128, 8
    $region9: #{mymodel_forward.1} parent=1 // pred_fallthru
      _
    // Predicated region
    $region10: #{mymodel_forward.1} parent=1 // pred_check
      _
    $region11: #{mymodel_forward.1} parent=1 // pred_check_branch
      %35 = sbr.rel (0) target = $region13
    $region12: #{mymodel_forward.1} parent=1 // pred_region
      %37 = dma.done [#allocation3], 128
    $region13: #{mymodel_forward.1} parent=1 // pred_fallthru
      _
    // Predicated region
    $region14: #{mymodel_forward.1} parent=1 // pred_check
      _
    $region15: #{mymodel_forward.1} parent=1 // pred_check_branch
      %39 = sbr.rel (0) target = $region17
    $region16: #{mymodel_forward.1} parent=1 // pred_region
      %41 = dma.done [#allocation6], 512
    $region17: #{mymodel_forward.1} parent=1 // pred_fallthru
      _
    %v42 = vld [vmem:[#allocation5] sm:$0xff]
    %v43 = vld [vmem:[#allocation5 + $0x8] sm:$0xff]
    %v44 = vld [vmem:[#allocation5 + $0x10] sm:$0x1]
    %v45 = vld [vmem:[#allocation5 + $0x11] sm:$0xff]
    %v46 = vld [vmem:[#allocation5 + $0x19] sm:$0x1]
    %v47 = vld [vmem:[#allocation5 + $0x1a] sm:$0x1]
    %v48 = vld [vmem:[#allocation5 + $0x1b] sm:$0x1]
    %v49 = vld [vmem:[#allocation2] sm:$0xff]
    %v50 = vperm.slane %v44, 0
    %vm51 = vcmask 261120
    %v53 = vsel %vm51, %v49, 0
    %v56 = vsel %vm51, %v42, 0
    %v59 = vsel %vm51, %v43, 0
    %61 = vmatpush.xpose.msra.mxu0 0.0
    %62 = vmatpush.xpose.msra.mxu0 0.0
    %63 = vmatpush.xpose.msra.mxu0 0.0
    %64 = vmatpush.xpose.msra.mxu0 0.0
    %65 = vmatpush.xpose.msra.mxu0 0.0
    %66 = vmatpush.xpose.msra.mxu0 0.0
    %67 = vmatpush.xpose.msra.mxu0 0.0
    %68 = vmatpush.xpose.msra.mxu0 0.0
    %69 = vmatpush.xpose.msra.mxu0 0.0
    %70 = vmatpush.xpose.msra.mxu0 0.0
    %71 = vmatpush.xpose.msra.mxu0 0.0
    %72 = vmatpush.xpose.msra.mxu0 0.0
    %73 = vmatpush.xpose.msra.mxu0 0.0
    %74 = vmatpush.xpose.msra.mxu0 0.0
    %75 = vmatpush.xpose.msra.mxu0 %v59
    %76 = vmatpush.xpose.msra.mxu0 %v56
    %77 = vmatmul.f32.gmra.mxu0 %v53
    %v78 = vpop.f32.mrf.mxu0
    %v79 = vadd.f32 %v50, %v78
    %80 = vdwg.mxu0
    %v81 = vmax.f32 %v79, 0.0
    %v82 = vperm.slane %v46, 0
    %vm83 = vcmask 130048
    %v85 = vsel %vm83, %v81, 0
    %v88 = vsel %vm83, %v45, 0
    %90 = vmatpush.xpose.msra.mxu0 0.0
    %91 = vmatpush.xpose.msra.mxu0 0.0
    %92 = vmatpush.xpose.msra.mxu0 0.0
    %93 = vmatpush.xpose.msra.mxu0 0.0
    %94 = vmatpush.xpose.msra.mxu0 0.0
    %95 = vmatpush.xpose.msra.mxu0 0.0
    %96 = vmatpush.xpose.msra.mxu0 0.0
    %97 = vmatpush.xpose.msra.mxu0 0.0
    %98 = vmatpush.xpose.msra.mxu0 0.0
    %99 = vmatpush.xpose.msra.mxu0 0.0
    %100 = vmatpush.xpose.msra.mxu0 0.0
    %101 = vmatpush.xpose.msra.mxu0 0.0
    %102 = vmatpush.xpose.msra.mxu0 0.0
    %103 = vmatpush.xpose.msra.mxu0 0.0
    %104 = vmatpush.xpose.msra.mxu0 0.0
    %105 = vmatpush.xpose.msra.mxu0 %v88
    %106 = vmatmul.f32.gmra.mxu0 %v85
    %v107 = vpop.f32.mrf.mxu0
    %v108 = vadd.f32 %v82, %v107
    %109 = vdwg.mxu0
    %v110 = vmax.f32 %v108, 0.0
    %112 = vset.pattern.permute.xlu0 0
    %113 = vperm.xlu0 %112, %v48
    %v114 = vpop.permute.xlu0 %113
    %vm116 = vcmask 64512
    %v118 = vsel %vm116, %v47, 0
    %v121 = vsel %vm116, %v110, 0
    %123 = vmatpush.xpose.msra.mxu0 0.0
    %124 = vmatpush.xpose.msra.mxu0 0.0
    %125 = vmatpush.xpose.msra.mxu0 0.0
    %126 = vmatpush.xpose.msra.mxu0 0.0
    %127 = vmatpush.xpose.msra.mxu0 0.0
    %128 = vmatpush.xpose.msra.mxu0 0.0
    %129 = vmatpush.xpose.msra.mxu0 0.0
    %130 = vmatpush.xpose.msra.mxu0 0.0
    %131 = vmatpush.xpose.msra.mxu0 0.0
    %132 = vmatpush.xpose.msra.mxu0 0.0
    %133 = vmatpush.xpose.msra.mxu0 0.0
    %134 = vmatpush.xpose.msra.mxu0 0.0
    %135 = vmatpush.xpose.msra.mxu0 0.0
    %136 = vmatpush.xpose.msra.mxu0 0.0
    %137 = vmatpush.xpose.msra.mxu0 0.0
    %138 = vmatpush.xpose.msra.mxu0 %v121
    %139 = vmatmul.f32.gmra.mxu0 %v118
    %v140 = vpop.f32.mrf.mxu0
    %v141 = vadd.f32 %v114, %v140
    %142 = vdwg.mxu0
    %vm143 = vcmask 57344
    %144 = vst.msk [vmem:[#allocation7] sm:$0x1] %vm143, %v141
    // Predicated region
    $region18: #{mymodel_forward.1} parent=1 // pred_check
      _
    $region19: #{mymodel_forward.1} parent=1 // pred_check_branch
      %146 = sbr.rel (0) target = $region21
    $region20: #{mymodel_forward.1} parent=1 // pred_region
      %148 = vsyncadd [#allocation4], 0
      %s150 = sshll.u32 [#allocation7], 4
      %s151 = int_to_ptr.vmem [resolvable:$true] %s150
      %s152 = sshll.u32 %s2, 4
      %s153 = int_to_ptr.hbm [resolvable:$true] %s152
      %155 = dma.vmem_to_hbm [thread:$0]  %s151, 16, %s153, [#allocation4]
    $region21: #{mymodel_forward.1} parent=1 // pred_fallthru
      _
    // Predicated region
    $region22: #{mymodel_forward.1} parent=1 // pred_check
      _
    $region23: #{mymodel_forward.1} parent=1 // pred_check_branch
      %157 = sbr.rel (0) target = $region25
    $region24: #{mymodel_forward.1} parent=1 // pred_region
      %159 = dma.done [#allocation4], 16
    $region25: #{mymodel_forward.1} parent=1 // pred_fallthru
      _
    %160 = vsyncpa [#allocation3], 1
    %161 = vsyncpa [#allocation6], 1
    %162 = vsyncpa [#allocation4], 1

</llo_original>
